<compile_context>
chip_gen: v7x
topology: tpu7x:2x2x1
jax: 0.10.0
libtpu: 0.0.40
codegen_flags: <defaults>
</compile_context>

<pallas_src>
import functools

import jax
import jax.numpy as jnp
from jax.experimental import pallas as pl
from jax.experimental.pallas import tpu as pltpu


def _round_up(v, m):
    return ((v + m - 1) // m) * m


def _pick_tile(total, cap):
    """Largest multiple of 128 that divides `total` and is <= cap (>= 128)."""
    best = 128
    t = 128
    limit = min(cap, total)
    while t <= limit:
        if total % t == 0:
            best = t
        t += 128
    return best


# ---------------------------------------------------------------------------
# RGCN layer
#   prologue: per-relation messages  msg[r, n, :] = x[n, :] @ W[r]
#   main    : out[i] = tanh(inv_deg[i] * (A2[i, :] @ MSG) + x[i] @ root + bias)
# where A2 is the int8 edge-count matrix with columns ordered (relation, src)
# and MSG is msg reshaped to [R*N_pad, Fout] (same (relation, src) row order).
# ---------------------------------------------------------------------------

def rgcn_messages(x_bf16, w_bf16, tm):
    """Per-layer message precompute: [R, N_pad, Fout] bf16 -> [R*N_pad, Fout]."""
    n_pad, f_in = x_bf16.shape
    num_rel, _, f_out = w_bf16.shape

    def msg_kernel(x_ref, w_ref, o_ref):
        o_ref[0] = jnp.dot(x_ref[...], w_ref[0],
                           preferred_element_type=jnp.float32).astype(o_ref.dtype)

    msg = pl.pallas_call(
        msg_kernel,
        out_shape=jax.ShapeDtypeStruct((num_rel, n_pad, f_out), jnp.bfloat16),
        grid_spec=pltpu.PrefetchScalarGridSpec(
            num_scalar_prefetch=0,
            grid=(num_rel, n_pad // tm),
            in_specs=[
                pl.BlockSpec((tm, f_in), lambda r, i: (i, 0)),
                pl.BlockSpec((1, f_in, f_out), lambda r, i: (r, 0, 0)),
            ],
            out_specs=pl.BlockSpec((1, tm, f_out), lambda r, i: (r, i, 0)),
        ),
        compiler_params=pltpu.CompilerParams(
            dimension_semantics=("parallel", "parallel")),
    )(x_bf16, w_bf16)
    return msg.reshape(num_rel * n_pad, f_out)


def rgcn_agg_kernel(a_ref, msg_ref, xd_ref, root_ref, b_ref, inv_ref, o_ref,
                    acc_ref):
    """Grid = (dst_tiles, rk_tiles); (relation, src) is the reduction axis.

    a_ref:   [TM, TKK]  int8 edge counts (streamed, dequantized under DMA)
    msg_ref: [TKK, Fout] bf16 precomputed messages
    xd_ref:  [TM, Fin]  bf16 dst features (root/self term)
    inv_ref: [TM, 1]    f32 per-dst 1/deg (applied only to the aggregation)
    acc_ref: [TM, Fout] f32 accumulator (pl.when init / finalize)
    """
    j = pl.program_id(1)

    @pl.when(j == 0)
    def _():
        acc_ref[...] = jnp.zeros_like(acc_ref)

    # int8 -> bf16 dequant is exact for small edge counts; VPU work hidden
    # under the A-tile DMA (the kernel is A-DMA bound).
    counts = a_ref[...].astype(jnp.float32).astype(jnp.bfloat16)
    acc_ref[...] += jnp.dot(counts, msg_ref[...],
                            preferred_element_type=jnp.float32)

    @pl.when(j == pl.num_programs(1) - 1)
    def _():
        root_term = jnp.dot(xd_ref[...], root_ref[...],
                            preferred_element_type=jnp.float32)
        # 1/deg scales ONLY the neighbor aggregation; root + bias unscaled.
        o_ref[...] = jnp.tanh(acc_ref[...] * inv_ref[...] + root_term
                              + b_ref[...])


def rgcn_layer(a2_int8, msg_flat, x_bf16, root_bf16, bias_f32, inv_deg,
               tm, tkk):
    """One RGCNConv + tanh on node-padded inputs -> [N_pad, Fout] f32."""
    n_pad, f_in = x_bf16.shape
    f_out = msg_flat.shape[1]
    rk = a2_int8.shape[1]
    return pl.pallas_call(
        rgcn_agg_kernel,
        out_shape=jax.ShapeDtypeStruct((n_pad, f_out), jnp.float32),
        grid_spec=pltpu.PrefetchScalarGridSpec(
            num_scalar_prefetch=0,
            grid=(n_pad // tm, rk // tkk),
            in_specs=[
                pl.BlockSpec((tm, tkk), lambda i, j: (i, j)),      # int8 counts
                pl.BlockSpec((tkk, f_out), lambda i, j: (j, 0)),   # bf16 msgs
                pl.BlockSpec((tm, f_in), lambda i, j: (i, 0)),     # dst feats
                pl.BlockSpec((f_in, f_out), lambda i, j: (0, 0)),  # root weight
                pl.BlockSpec((1, f_out), lambda i, j: (0, 0)),     # bias
                pl.BlockSpec((tm, 1), lambda i, j: (i, 0)),        # 1/deg
            ],
            out_specs=pl.BlockSpec((tm, f_out), lambda i, j: (i, 0)),
            scratch_shapes=[pltpu.VMEM((tm, f_out), jnp.float32)],
        ),
        compiler_params=pltpu.CompilerParams(
            dimension_semantics=("parallel", "arbitrary"),
            vmem_limit_bytes=32 * 1024 * 1024),
    )(a2_int8, msg_flat, x_bf16, root_bf16, bias_f32, inv_deg)


# ---------------------------------------------------------------------------
# Fused post-pooling head: conv1 + relu + maxpool + conv2 + relu + lin1 + lin2
# (tiled over graph blocks)
# ---------------------------------------------------------------------------

def head_kernel(batch, k, ksize, sp_ref, w1_ref, b1_ref, w2_ref, b2_ref,
                l1w_ref, l1b_ref, l2w_ref, l2b_ref, o_ref):
    """sp_ref: [B*k, D] sort-pooled features (row order = (graph, position))."""
    c1 = w1_ref.shape[1]
    c2 = w2_ref.shape[1]
    half = k // 2
    l_out = half - ksize + 1

    # Conv1d(1, c1, kernel=D, stride=D) + ReLU == per-(graph, position) linear.
    h1 = jnp.dot(sp_ref[...], w1_ref[...],
                 preferred_element_type=jnp.float32) + b1_ref[...]
    h1 = jnp.maximum(h1, 0.0)                              # [B*k, c1]

    # MaxPool1d(2, 2): k is even, so pooled pairs never cross graph boundaries.
    h1 = h1.reshape(batch * half, 2, c1)
    pooled = jnp.maximum(h1[:, 0, :], h1[:, 1, :])         # [B*half, c1]
    pooled = pooled.reshape(batch, half, c1)               # [B, half, c1]

    # Conv1d(c1, c2, kernel=ksize, stride=1) + ReLU via im2col and a SINGLE
    # matmul over all (graph, position) rows (no per-position loop).
    patches = jnp.concatenate(
        [pooled[:, t:t + l_out, :] for t in range(ksize)], axis=-1)
    h2 = jnp.dot(patches.reshape(batch * l_out, ksize * c1), w2_ref[...],
                 preferred_element_type=jnp.float32) + b2_ref[...]
    h2 = jnp.maximum(h2, 0.0).reshape(batch, l_out, c2)

    # Flatten in (position, channel) order; lin1 weights were pre-permuted to
    # match torch's channel-major x.view(len(x), -1).
    flat = jnp.concatenate([h2[:, t, :] for t in range(l_out)], axis=-1)

    h3 = jnp.dot(flat, l1w_ref[...],
                 preferred_element_type=jnp.float32) + l1b_ref[...]
    h3 = jnp.maximum(h3, 0.0)                              # [B, 128]

    logits = jnp.dot(h3, l2w_ref[...],
                     preferred_element_type=jnp.float32) + l2b_ref[...]
    m = jnp.max(logits, axis=-1, keepdims=True)
    z = logits - m
    o_ref[...] = z - jnp.log(jnp.sum(jnp.exp(z), axis=-1, keepdims=True))


def dgcnn_head(sp2d, w1, b1, w2f, b2, l1w, l1b, l2w, l2b, num_graphs, k, ksize,
               max_graphs_per_block=128):
    num_classes = l2w.shape[1]
    d = sp2d.shape[1]
    bt = min(num_graphs, max_graphs_per_block)
    n_blocks = -(-num_graphs // bt)
    g_pad = n_blocks * bt
    if g_pad != num_graphs:   # zero-pad to a whole number of graph blocks
        sp2d = jnp.concatenate(
            [sp2d, jnp.zeros(((g_pad - num_graphs) * k, d), sp2d.dtype)],
            axis=0)

    kern = functools.partial(head_kernel, bt, k, ksize)
    out = pl.pallas_call(
        kern,
        out_shape=jax.ShapeDtypeStruct((g_pad, num_classes), jnp.float32),
        grid_spec=pltpu.PrefetchScalarGridSpec(
            num_scalar_prefetch=0,
            grid=(n_blocks,),
            in_specs=[
                pl.BlockSpec((bt * k, d), lambda g: (g, 0)),
                pl.BlockSpec(w1.shape, lambda g: (0, 0)),
                pl.BlockSpec(b1.shape, lambda g: (0, 0)),
                pl.BlockSpec(w2f.shape, lambda g: (0, 0)),
                pl.BlockSpec(b2.shape, lambda g: (0, 0)),
                pl.BlockSpec(l1w.shape, lambda g: (0, 0)),
                pl.BlockSpec(l1b.shape, lambda g: (0, 0)),
                pl.BlockSpec(l2w.shape, lambda g: (0, 0)),
                pl.BlockSpec(l2b.shape, lambda g: (0, 0)),
            ],
            out_specs=pl.BlockSpec((bt, num_classes), lambda g: (g, 0)),
        ),
        compiler_params=pltpu.CompilerParams(
            dimension_semantics=("parallel",)),
    )(sp2d, w1, b1, w2f, b2, l1w, l1b, l2w, l2b)
    # TODO(synk): pad the logits block to a 128-lane width (unmasked stores)
    # when num_classes is tiny and the batch is very large.
    return out[:num_graphs]


# ---------------------------------------------------------------------------
# Plain-JAX glue: global_sort_pool (data-dependent sort / scatter)
# ---------------------------------------------------------------------------

def global_sort_pool(x, batch, num_graphs, k):
    """torch_geometric.nn.global_sort_pool semantics (sort by last channel)."""
    n_nodes, d = x.shape
    fill = jnp.min(x) - 1.0
    counts = jnp.zeros((num_graphs,), jnp.int32).at[batch].add(1)
    starts = jnp.concatenate([jnp.zeros((1,), jnp.int32), jnp.cumsum(counts)[:-1]])
    pos = jnp.arange(n_nodes, dtype=jnp.int32) - starts[batch]
    dense = jnp.full((num_graphs, n_nodes, d), fill, dtype=x.dtype)
    dense = dense.at[batch, pos].set(x)
    order = jnp.argsort(-dense[:, :, -1], axis=-1)             # descending
    dense = jnp.take_along_axis(dense, order[:, :, None], axis=1)
    if n_nodes >= k:
        dense = dense[:, :k]
    else:
        pad = jnp.full((num_graphs, k - n_nodes, d), fill, dtype=x.dtype)
        dense = jnp.concatenate([dense, pad], axis=1)
    dense = jnp.where(dense == fill, 0.0, dense)
    return dense.reshape(num_graphs, k * d)


# ---------------------------------------------------------------------------
# Model
# ---------------------------------------------------------------------------

def init_params(key, num_features, latent_dim, num_relations, num_bases, k,
                num_classes):
    keys = jax.random.split(key, 32)
    ki = [0]

    def nxt():
        kk = keys[ki[0]]
        ki[0] += 1
        return kk

    dims = [num_features] + list(latent_dim)
    convs = []
    for i in range(len(latent_dim)):
        fin, fout = dims[i], dims[i + 1]
        convs.append({
            "basis": 0.2 * jax.random.normal(nxt(), (num_bases, fin, fout), jnp.float32),
            "att":   0.2 * jax.random.normal(nxt(), (num_relations, num_bases), jnp.float32),
            "root":  0.2 * jax.random.normal(nxt(), (fin, fout), jnp.float32),
            "bias":  0.05 * jax.random.normal(nxt(), (fout,), jnp.float32),
        })

    total_latent_dim = sum(latent_dim)                   # 97
    c1, c2, kw2 = 16, 32, 5
    dense_dim = ((k - 2) // 2 + 1 - kw2 + 1) * c2        # 352 for k=30

    params = {
        "convs": convs,
        # Conv1d(1, 16, kernel=97, stride=97) -> [D, 16] matmul
        "w1": 0.1 * jax.random.normal(nxt(), (total_latent_dim, c1), jnp.float32),
        "b1": 0.05 * jax.random.normal(nxt(), (c1,), jnp.float32),
        # Conv1d(16, 32, kernel=5, stride=1): torch weight [32,16,5] -> [5,16,32]
        "w2t": 0.1 * jax.random.normal(nxt(), (kw2, c1, c2), jnp.float32),
        "b2": 0.05 * jax.random.normal(nxt(), (c2,), jnp.float32),
        "lin1_w": 0.1 * jax.random.normal(nxt(), (dense_dim, 128), jnp.float32),
        "lin1_b": 0.05 * jax.random.normal(nxt(), (128,), jnp.float32),
        "lin2_w": 0.1 * jax.random.normal(nxt(), (128, num_classes), jnp.float32),
        "lin2_b": 0.05 * jax.random.normal(nxt(), (num_classes,), jnp.float32),
    }
    return params


def dgcnn_rs_forward(params, x, edge_src, edge_dst, edge_type, batch,
                     num_graphs, k):
    """Eval-mode forward (adj_dropout and F.dropout are identities in eval)."""
    n_nodes, num_features = x.shape
    num_relations = params["convs"][0]["att"].shape[0]

    n_pad = _round_up(n_nodes, 128)
    # dst tile: keep >= 2 tiles once n_pad >= 256 so the "parallel" axis can
    # shard across v7x's two TensorCores; (relation, src) tile up to 1024 for
    # fewer grid steps / longer DMA runs (A blocks stay small since int8).
    tm_cap = 512 if n_pad < 256 else min(512, n_pad // 2)
    tm = _pick_tile(n_pad, tm_cap)
    tkk = _pick_tile(num_relations * n_pad, 1024)

    # Adjacency built ONCE, directly in the streamed dtype/layout: int8 edge
    # counts, columns ordered (relation, src).  Numerically exact; the 1/deg
    # normalization is applied per dst row inside the kernel finalize.
    ones = jnp.ones_like(edge_dst, jnp.int8)
    a2 = jnp.zeros((n_pad, num_relations * n_pad), jnp.int8)
    a2 = a2.at[edge_dst, edge_type * n_pad + edge_src].add(ones)
    # TODO(synk): for large sparse graphs replace the dense count matrix with a
    # CSR/edge-list gather via PrefetchScalarGridSpec and skip empty src tiles.

    # Total in-degree over all relations (keeps the previous implementation's
    # convention; PyG RGCNConv aggr='mean' normalizes per relation).
    deg = jnp.zeros((n_pad,), jnp.float32).at[edge_dst].add(1.0)
    inv_deg = (1.0 / jnp.maximum(deg, 1.0)).reshape(n_pad, 1)

    h_pad = jnp.zeros((n_pad, num_features), jnp.bfloat16)
    h_pad = h_pad.at[:n_nodes].set(x.astype(jnp.bfloat16))

    concat = []
    for layer in params["convs"]:
        # basis decomposition: W[r] = sum_b att[r,b] * basis[b]  (param prep)
        w = jnp.einsum("rb,bio->rio", layer["att"], layer["basis"])
        msg = rgcn_messages(h_pad, w.astype(jnp.bfloat16), tm)  # [R*N_pad, Fout]
        out_pad = rgcn_layer(
            a2, msg, h_pad,
            layer["root"].astype(jnp.bfloat16),
            layer["bias"].reshape(1, -1).astype(jnp.float32),
            inv_deg, tm, tkk)
        concat.append(out_pad[:n_nodes])
        # Padded rows carry tanh(bias) but their adjacency columns are zero,
        # so feeding them to the next layer is harmless.
        h_pad = out_pad.astype(jnp.bfloat16)

    # TODO(synk): write the four layers straight into one lane-dense
    # [N_pad, 128] slab (column-offset out_specs + input_output_aliases)
    # instead of separate 32/32/32/1-wide outputs + XLA concatenate.
    hcat = jnp.concatenate(concat, axis=1)               # [N, 97] f32
    d = hcat.shape[1]

    sp = global_sort_pool(hcat, batch, num_graphs, k)    # [B, k*D]
    sp2d = sp.reshape(num_graphs * k, d)                 # [B*k, D]

    # Parameter prep for the fused head (done once, plain JAX).
    w2t = params["w2t"]
    ksize, c1, c2 = w2t.shape
    w2f = w2t.reshape(ksize * c1, c2)                    # rows ordered (tap, c1)
    l_out = k // 2 - ksize + 1
    # torch flattens [B, c2, l_out] channel-major; the fused head produces
    # (position, channel) order, so permute lin1's rows to match.
    l1w_perm = (params["lin1_w"]
                .reshape(c2, l_out, -1)
                .transpose(1, 0, 2)
                .reshape(l_out * c2, -1))

    return dgcnn_head(
        sp2d,
        params["w1"], params["b1"].reshape(1, -1),
        w2f, params["b2"].reshape(1, -1),
        l1w_perm, params["lin1_b"].reshape(1, -1),
        params["lin2_w"], params["lin2_b"].reshape(1, -1),
        num_graphs, k, ksize)


# ---------------------------------------------------------------------------
# Example run
# ---------------------------------------------------------------------------

if __name__ == "__main__":
    num_features = 4
    latent_dim = [32, 32, 32, 1]
    num_relations = 5
    num_bases = 2
    k = 30
    num_classes = 5
    graph_sizes = [10, 12]
    num_graphs = len(graph_sizes)
    n_nodes = sum(graph_sizes)
    edges_per_graph = 40

    key = jax.random.PRNGKey(0)
    k_param, k_x, k_edge, k_type = jax.random.split(key, 4)

    params = init_params(k_param, num_features, latent_dim, num_relations,
                         num_bases, k, num_classes)

    x = jax.random.normal(k_x, (n_nodes, num_features), jnp.float32)
    batch = jnp.concatenate(
        [jnp.full((n,), i, jnp.int32) for i, n in enumerate(graph_sizes)])

    # random intra-graph edges
    src_list, dst_list = [], []
    off = 0
    kk = k_edge
    for n in graph_sizes:
        kk, ks, kd = jax.random.split(kk, 3)
        src_list.append(jax.random.randint(ks, (edges_per_graph,), 0, n) + off)
        dst_list.append(jax.random.randint(kd, (edges_per_graph,), 0, n) + off)
        off += n
    edge_src = jnp.concatenate(src_list)
    edge_dst = jnp.concatenate(dst_list)
    num_edges = edge_src.shape[0]
    edge_type = jax.random.randint(k_type, (num_edges,), 0, num_relations)

    out = dgcnn_rs_forward(params, x, edge_src, edge_dst, edge_type, batch,
                           num_graphs, k)
    out = jax.block_until_ready(out)
    assert out.shape == (num_graphs, num_classes)
    assert bool(jnp.all(jnp.isfinite(out)))
    # log_softmax rows should sum to ~1 in prob space
    assert bool(jnp.allclose(jnp.sum(jnp.exp(out), axis=-1), 1.0, atol=1e-4))
    print("KERNEL_OK")
</pallas_src>

<mosaic_0001>
module attributes {stable_mosaic.version = 11 : i64} {
  func.func @msg_kernel(%arg0: i32, %arg1: i32, %arg2: memref<128x4xbf16, #tpu.memory_space<vmem>>, %arg3: memref<1x4x32xbf16, #tpu.memory_space<vmem>>, %arg4: memref<1x128x32xbf16, #tpu.memory_space<vmem>>) attributes {dimension_semantics = [#tpu.dimension_semantics<parallel>, #tpu.dimension_semantics<parallel>], iteration_bounds = array<i64: 5, 1>, scalar_prefetch = 0 : i64, scratch_operands = 0 : i64, tpu.core_type = #tpu.core_type<tc>, window_params = [{transform_indices = @transform_0, window_bounds = array<i64: 128, 4>}, {transform_indices = @transform_1, window_bounds = array<i64: 1, 4, 32>}, {transform_indices = @transform_2, window_bounds = array<i64: 1, 128, 32>}]} {
    %c0 = arith.constant 0 : index
    %c0_0 = arith.constant 0 : index
    %0 = vector.load %arg2[%c0, %c0_0] : memref<128x4xbf16, #tpu.memory_space<vmem>>, vector<128x4xbf16>
    %c0_1 = arith.constant 0 : index
    %c0_2 = arith.constant 0 : index
    %c0_3 = arith.constant 0 : index
    %1 = vector.load %arg3[%c0_1, %c0_2, %c0_3] : memref<1x4x32xbf16, #tpu.memory_space<vmem>>, vector<1x4x32xbf16>
    %2 = vector.shape_cast %1 : vector<1x4x32xbf16> to vector<4x32xbf16>
    %cst = arith.constant dense<0.000000e+00> : vector<128x32xf32>
    %3 = tpu.matmul %0, %2, %cst {dimension_numbers = #tpu.dot_dimension_numbers<[1], [0], [0], [1], [0, 0, 1, 1], [], []>} : vector<128x4xbf16>, vector<4x32xbf16>, vector<128x32xf32> -> vector<128x32xf32>
    %4 = arith.truncf %3 : vector<128x32xf32> to vector<128x32xbf16>
    %c0_4 = arith.constant 0 : index
    %c0_5 = arith.constant 0 : index
    %c0_6 = arith.constant 0 : index
    %5 = vector.load %arg4[%c0_4, %c0_5, %c0_6] : memref<1x128x32xbf16, #tpu.memory_space<vmem>>, vector<1x128x32xbf16>
    %6 = vector.shape_cast %5 : vector<1x128x32xbf16> to vector<128x32xbf16>
    %7 = vector.shape_cast %4 : vector<128x32xbf16> to vector<1x128x32xbf16>
    tpu.vector_store %arg4[%c0_4, %c0_5, %c0_6], %7 {strides = array<i32>} : memref<1x128x32xbf16, #tpu.memory_space<vmem>>, vector<1x128x32xbf16>,
    return
  }
  func.func @transform_0(%arg0: i32, %arg1: i32) -> (i32, i32) {
    %c0_i32 = arith.constant 0 : i32
    %c0_i32_0 = arith.constant 0 : i32
    return %arg1, %c0_i32 : i32, i32
  }
  func.func @transform_1(%arg0: i32, %arg1: i32) -> (i32, i32, i32) {
    %c0_i32 = arith.constant 0 : i32
    %c0_i32_0 = arith.constant 0 : i32
    %c0_i32_1 = arith.constant 0 : i32
    return %arg0, %c0_i32, %c0_i32_0 : i32, i32, i32
  }
  func.func @transform_2(%arg0: i32, %arg1: i32) -> (i32, i32, i32) {
    %c0_i32 = arith.constant 0 : i32
    %c0_i32_0 = arith.constant 0 : i32
    return %arg0, %arg1, %c0_i32 : i32, i32, i32
  }
}

</mosaic_0001>

<llo_original>
// kernel: tpu_custom_call.1
$region0: #{tpu_custom_call.1}
  #allocation0 [shape = 'u32[]', space=smem, size = 0x4, offset = 0x4, fixed_abs, tag = 'smem constant byte address 0x4 - core index']
  #allocation1 [shape = 'u32[144,128]{1,0:T(1,128)}', space=vmem, size = 0x12000, scoped, tag = 'internal scratch']
  %s0 = inlined_call_operand.vmem [shape: bf16[128,4], index: 0, kind: input, shape index: {}]
  %s1 = inlined_call_operand.vmem [shape: bf16[5,4,32], index: 1, kind: input, shape index: {}]
  %s2 = inlined_call_operand.vmem [shape: bf16[5,128,32], index: 2, kind: output, shape index: {}]
  %s3 = sld [smem:[#allocation0]]
  $region41: #{tpu_custom_call.1} parent=0
    _
  %s5 = ssub.s32 1, %s3
  %s6 = scalar_select 0, %s5, %s3
  loop: start=0, step=1, limit=7
  $region2: #{tpu_custom_call.1} parent=0 // loop_pre_header
    _
  $region3: #{tpu_custom_call.1} parent=0 // loop_header
    %s8 = sphi 0, %s12
    %p9 = scmp.ge.s32.totalorder %s8, 7
    %s15 = sphi 0, %s27
    %s16 = sphi 0, %s23
    %s17 = sphi 0, %s15
    %s18 = sphi 0, %s16
    %s19 = sphi 0, %s17
    %s20 = sphi 0, %s18
    %s30 = sphi 0, %s32
    %s33 = sphi 0, %s30
    %s34 = sphi 0, %s33
    %s50 = sphi 0, %s34
    %s56 = sphi 0, %s58
    %s59 = sphi 0, %s56
    %s60 = sphi 0, %s59
    %s76 = sphi 0, %s60
    %s84 = sphi 0, %s86
    %s87 = sphi 0, %s84
    %s88 = sphi 0, %s87
    %s104 = sphi 0, %s88
  $region4: #{tpu_custom_call.1} parent=0 // loop_header_branch
    %11 = sbr.rel (%p9) target = $region8
  $region5: #{tpu_custom_call.1} parent=0 // loop_body
    %s13 = ssub.s32 %s8, 1
    %s14 = ssub.s32 %s8, 2
    %s21 = sadd.s32 1, %s16
    %p22 = scmp.ge.s32.totalorder %s21, 1
    %s23 = scalar_select %p22, 0, %s21
    %s24 = sadd.s32 1, %s15
    %s25 = scalar_select %p22, %s24, %s15
    %p26 = scmp.ge.s32.totalorder %s25, 5
    %s27 = scalar_select %p26, 0, %s25
    %s28 = ssub.s32 %s16, %s23
    %p29 = scmp.eq.s32.totalorder %s28, 0
    %s31 = sadd.s32 %s30, 1
    %s32 = scalar_select %p29, %s30, %s31
    %p35 = pneg %p29
    %p36 = scmp.eq.s32.totalorder %s8, 4
    %p37 = por %p35, %p36
    %p38 = scmp.ne.s32.totalorder %s30, %s33
    %p39 = scmp.eq.s32.totalorder %s8, 0
    %p40 = por %p38, %p39
    %p41 = scmp.ne.s32.totalorder %s30, %s33
    %p42 = scmp.eq.s32.totalorder %s13, 4
    %p43 = por %p41, %p42
    %p44 = scmp.ne.s32.totalorder %s33, %s34
    %p45 = scmp.eq.s32.totalorder %s13, 0
    %p46 = por %p44, %p45
    %p47 = scmp.ne.s32.totalorder %s33, %s34
    %p48 = scmp.eq.s32.totalorder %s14, 4
    %p49 = por %p47, %p48
    %p51 = scmp.ne.s32.totalorder %s34, %s50
    %p52 = scmp.eq.s32.totalorder %s14, 0
    %p53 = por %p51, %p52
    %s54 = ssub.s32 %s15, %s27
    %p55 = scmp.eq.s32.totalorder %s54, 0
    %s57 = sadd.s32 %s56, 1
    %s58 = scalar_select %p55, %s56, %s57
    %p61 = pneg %p55
    %p62 = scmp.eq.s32.totalorder %s8, 4
    %p63 = por %p61, %p62
    %p64 = scmp.ne.s32.totalorder %s56, %s59
    %p65 = scmp.eq.s32.totalorder %s8, 0
    %p66 = por %p64, %p65
    %p67 = scmp.ne.s32.totalorder %s56, %s59
    %p68 = scmp.eq.s32.totalorder %s13, 4
    %p69 = por %p67, %p68
    %p70 = scmp.ne.s32.totalorder %s59, %s60
    %p71 = scmp.eq.s32.totalorder %s13, 0
    %p72 = por %p70, %p71
    %p73 = scmp.ne.s32.totalorder %s59, %s60
    %p74 = scmp.eq.s32.totalorder %s14, 4
    %p75 = por %p73, %p74
    %p77 = scmp.ne.s32.totalorder %s60, %s76
    %p78 = scmp.eq.s32.totalorder %s14, 0
    %p79 = por %p77, %p78
    %s80 = ssub.s32 %s15, %s27
    %s81 = ssub.s32 %s16, %s23
    %s82 = sor.u32 %s80, %s81
    %p83 = scmp.eq.s32.totalorder %s82, 0
    %s85 = sadd.s32 %s84, 1
    %s86 = scalar_select %p83, %s84, %s85
    %p89 = pneg %p83
    %p90 = scmp.eq.s32.totalorder %s8, 4
    %p91 = por %p89, %p90
    %p92 = scmp.ne.s32.totalorder %s84, %s87
    %p93 = scmp.eq.s32.totalorder %s8, 0
    %p94 = por %p92, %p93
    %p95 = scmp.ne.s32.totalorder %s84, %s87
    %p96 = scmp.eq.s32.totalorder %s13, 4
    %p97 = por %p95, %p96
    %p98 = scmp.ne.s32.totalorder %s87, %s88
    %p99 = scmp.eq.s32.totalorder %s13, 0
    %p100 = por %p98, %p99
    %p101 = scmp.ne.s32.totalorder %s87, %s88
    %p102 = scmp.eq.s32.totalorder %s14, 4
    %p103 = por %p101, %p102
    %p105 = scmp.ne.s32.totalorder %s88, %s104
    %p106 = scmp.eq.s32.totalorder %s14, 0
    %p107 = por %p105, %p106
    %p108 = scmp.le.s32.totalorder 1, %s8
    %p109 = scmp.lt.s32.totalorder %s8, 6
    %p110 = pnand %p108, %p109
    %p111 = pneg %p110
    // Predicated region
    $region9: #{tpu_custom_call.1} parent=5 // pred_check
      _
    $region10: #{tpu_custom_call.1} parent=5 // pred_check_branch
      %113 = sbr.rel (%p110) target = $region12
    $region11: #{tpu_custom_call.1} parent=5 // pred_region
      %s114 = ssub.s32 %s8, 1
      // Predicated region
      $region13: #{tpu_custom_call.1} parent=11 // pred_check
        %p115 = pneg %p46
      $region14: #{tpu_custom_call.1} parent=11 // pred_check_branch
        %117 = sbr.rel (%p115) target = $region16
      $region15: #{tpu_custom_call.1} parent=11 // pred_region
        %s118 = smul.u32 16, %s18
        %p119 = scmp.lt.s32.totalorder %s118, 15
        %s120 = scalar_select %p119, %s118, 15
        %s121 = smul.addr %s120, 4
        %s122 = scalar_lea.vmem %s0, %s121
        %s123 = smul.u32 16, %s18
      $region16: #{tpu_custom_call.1} parent=11 // pred_fallthru
        _
    $region12: #{tpu_custom_call.1} parent=5 // pred_fallthru
      _
    %p124 = scmp.lt.s32.totalorder %s8, 5
    // Predicated region
    $region17: #{tpu_custom_call.1} parent=5 // pred_check
      %p125 = pneg %p124
    $region18: #{tpu_custom_call.1} parent=5 // pred_check_branch
      %127 = sbr.rel (%p125) target = $region20
    $region19: #{tpu_custom_call.1} parent=5 // pred_region
      // Predicated region
      $region21: #{tpu_custom_call.1} parent=19 // pred_check
        %p128 = pneg %p66
      $region22: #{tpu_custom_call.1} parent=19 // pred_check_branch
        %130 = sbr.rel (%p128) target = $region24
      $region23: #{tpu_custom_call.1} parent=19 // pred_region
        %p131 = scmp.lt.s32.totalorder %s15, 4
        %s132 = scalar_select %p131, %s15, 4
        %s133 = smul.addr %s132, 2
        %s134 = scalar_lea.vmem %s1, %s133
      $region24: #{tpu_custom_call.1} parent=19 // pred_fallthru
        _
    $region20: #{tpu_custom_call.1} parent=5 // pred_fallthru
      _
    %p135 = scmp.le.s32.totalorder 1, %s8
    %p136 = scmp.lt.s32.totalorder %s8, 6
    %p137 = pnand %p135, %p136
    %p138 = pneg %p137
    // Predicated region
    $region25: #{tpu_custom_call.1} parent=5 // pred_check
      _
    $region26: #{tpu_custom_call.1} parent=5 // pred_check_branch
      %140 = sbr.rel (%p137) target = $region28
    $region27: #{tpu_custom_call.1} parent=5 // pred_region
      %s141 = ssub.s32 %s8, 1
      %s142 = smul.u32 16, %s18
      %p143 = scmp.lt.s32.totalorder %s142, 15
      %s144 = scalar_select %p143, %s142, 15
      %s145 = smul.addr %s144, 4
      %s146 = scalar_lea.vmem %s0, %s145
      %p147 = pneg %p46
      %p148 = pneg %p43
      %p149 = scmp.lt.s32.totalorder %s17, 4
      %s150 = scalar_select %p149, %s17, 4
      %s151 = smul.addr %s150, 2
      %s152 = scalar_lea.vmem %s1, %s151
      %p153 = pneg %p72
      %p154 = pneg %p69
      %p155 = pneg %p100
      %p156 = pneg %p97
      %s157 = smul.u32 16, %s18
      %p158 = scmp.lt.s32.totalorder %s17, 4
      %s159 = scalar_select %p158, %s17, 4
      %p160 = scmp.lt.s32.totalorder %s157, 15
      %s161 = scalar_select %p160, %s157, 15
      %s162 = smul.addr %s159, 16
      %s163 = sadd.s32 %s161, %s162
      %s164 = smul.addr %s163, 4
      %s165 = scalar_lea.vmem %s2, %s164
      %s166 = smul.u32 16, %s18
      %p167 = scmp.lt.s32.totalorder %s166, 15
      %s168 = scalar_select %p167, %s166, 15
      %s169 = smul.addr %s168, 4
      %s170 = scalar_lea.vmem %s0, %s169
      %s171 = smul.u32 16, %s18
      %p172 = scmp.lt.s32.totalorder %s17, 4
      %s173 = scalar_select %p172, %s17, 4
      %s174 = smul.addr %s173, 2
      %s175 = scalar_lea.vmem %s1, %s174
      %s176 = smul.u32 16, %s18
      %p177 = scmp.lt.s32.totalorder %s17, 4
      %s178 = scalar_select %p177, %s17, 4
      %p179 = scmp.lt.s32.totalorder %s176, 15
      %s180 = scalar_select %p179, %s176, 15
      %s181 = smul.addr %s178, 16
      %s182 = sadd.s32 %s180, %s181
      %s183 = smul.addr %s182, 4
      %s184 = scalar_lea.vmem %s2, %s183
      %s185 = smul.u32 16, %s18
      %v187 = vld [vmem:[%s170] sm:$0xf]
      %v188 = vld [vmem:[%s170 + $0x4] sm:$0xf]
      %v189 = vld [vmem:[%s170 + $0x8] sm:$0xf]
      %v190 = vld [vmem:[%s170 + $0xc] sm:$0xf]
      %v191 = vld [vmem:[%s170 + $0x10] sm:$0xf]
      %v192 = vld [vmem:[%s170 + $0x14] sm:$0xf]
      %v193 = vld [vmem:[%s170 + $0x18] sm:$0xf]
      %v194 = vld [vmem:[%s170 + $0x1c] sm:$0xf]
      %v195 = vld [vmem:[%s170 + $0x20] sm:$0xf]
      %v196 = vld [vmem:[%s170 + $0x24] sm:$0xf]
      %v197 = vld [vmem:[%s170 + $0x28] sm:$0xf]
      %v198 = vld [vmem:[%s170 + $0x2c] sm:$0xf]
      %v199 = vld [vmem:[%s170 + $0x30] sm:$0xf]
      %v200 = vld [vmem:[%s170 + $0x34] sm:$0xf]
      %v201 = vld [vmem:[%s170 + $0x38] sm:$0xf]
      %v202 = vld [vmem:[%s170 + $0x3c] sm:$0xf]
      %v203 = vld [vmem:[%s175] sm:$0x3]
      %v220 = vunpack.c.l.b16 %v187
      %v221 = vunpack.c.l.b16 %v188
      %v222 = vunpack.c.l.b16 %v189
      %v223 = vunpack.c.l.b16 %v190
      %v224 = vunpack.c.l.b16 %v191
      %v225 = vunpack.c.l.b16 %v192
      %v226 = vunpack.c.l.b16 %v193
      %v227 = vunpack.c.l.b16 %v194
      %v228 = vunpack.c.l.b16 %v195
      %v229 = vunpack.c.l.b16 %v196
      %v230 = vunpack.c.l.b16 %v197
      %v231 = vunpack.c.l.b16 %v198
      %v232 = vunpack.c.l.b16 %v199
      %v233 = vunpack.c.l.b16 %v200
      %v234 = vunpack.c.l.b16 %v201
      %v235 = vunpack.c.l.b16 %v202
      %v236 = vpack.c.b16 %v221, %v220
      %v237 = vpack.c.b16 %v223, %v222
      %v238 = vpack.c.b16 %v225, %v224
      %v239 = vpack.c.b16 %v227, %v226
      %v240 = vpack.c.b16 %v229, %v228
      %v241 = vpack.c.b16 %v231, %v230
      %v242 = vpack.c.b16 %v233, %v232
      %v243 = vpack.c.b16 %v235, %v234
      %vm244 = vcmask 31744
      %v246 = vsel %vm244, %v236, 0
      %v249 = vsel %vm244, %v237, 0
      %v252 = vsel %vm244, %v238, 0
      %v255 = vsel %vm244, %v239, 0
      %v258 = vsel %vm244, %v240, 0
      %v261 = vsel %vm244, %v241, 0
      %v264 = vsel %vm244, %v242, 0
      %v267 = vsel %vm244, %v243, 0
      %vm269 = vcmask 1041408
      %v271 = vsel %vm269, %v203, 0
      %273 = vmatprep.subr.bf16.mxu0 0
      %274 = vmatpush1.bf16.msra.mxu0 %v271
      %275 = vmatprep.subr.bf16.mxu0 0
      %276 = vmatpush1.bf16.msra.mxu0 0
      %277 = vmatprep.subr.bf16.mxu0 0
      %278 = vmatpush1.bf16.msra.mxu0 0
      %279 = vmatprep.subr.bf16.mxu0 0
      %280 = vmatpush1.bf16.msra.mxu0 0
      %281 = vmatprep.subr.bf16.mxu0 0
      %282 = vmatpush1.bf16.msra.mxu0 0
      %283 = vmatprep.subr.bf16.mxu0 0
      %284 = vmatpush1.bf16.msra.mxu0 0
      %285 = vmatprep.subr.bf16.mxu0 0
      %286 = vmatpush1.bf16.msra.mxu0 0
      %287 = vmatprep.subr.bf16.mxu0 0
      %288 = vmatpush1.bf16.msra.mxu0 0
      %289 = vmatprep.subr.bf16.mxu0 0
      %290 = vmatpush1.bf16.msra.mxu0 0
      %291 = vmatprep.subr.bf16.mxu0 0
      %292 = vmatpush1.bf16.msra.mxu0 0
      %293 = vmatprep.subr.bf16.mxu0 0
      %294 = vmatpush1.bf16.msra.mxu0 0
      %295 = vmatprep.subr.bf16.mxu0 0
      %296 = vmatpush1.bf16.msra.mxu0 0
      %297 = vmatprep.subr.bf16.mxu0 0
      %298 = vmatpush1.bf16.msra.mxu0 0
      %299 = vmatprep.subr.bf16.mxu0 0
      %300 = vmatpush1.bf16.msra.mxu0 0
      %301 = vmatprep.subr.bf16.mxu0 0
      %302 = vmatpush1.bf16.msra.mxu0 0
      %303 = vmatprep.subr.bf16.mxu0 0
      %304 = vmatpush1.bf16.msra.mxu0 0
      %305 = vmatprep.mubr.bf16.mxu0 0
      %306 = vmatmul.mubr.bf16.gmra.mrb[0].mxu0 %v246
      %v307 = vpop.f32.mrb[0].mxu0
      %v308 = vadd.f32 0.0, %v307
      %v309 = vpop.f32.mrb[0].mxu0
      %v310 = vpop.f32.mrb[0].mxu0
      %v311 = vadd.f32 0.0, %v310
      %v312 = vpop.f32.mrb[0].mxu0
      %313 = vmatprep.mubr.bf16.mxu0 0
      %314 = vmatmul.mubr.bf16.gmra.mrb[0].mxu0 %v249
      %v315 = vpop.f32.mrb[0].mxu0
      %v316 = vadd.f32 0.0, %v315
      %v317 = vpop.f32.mrb[0].mxu0
      %v318 = vpop.f32.mrb[0].mxu0
      %v319 = vadd.f32 0.0, %v318
      %v320 = vpop.f32.mrb[0].mxu0
      %321 = vmatprep.mubr.bf16.mxu0 0
      %322 = vmatmul.mubr.bf16.gmra.mrb[0].mxu0 %v252
      %v323 = vpop.f32.mrb[0].mxu0
      %v324 = vadd.f32 0.0, %v323
      %v325 = vpop.f32.mrb[0].mxu0
      %v326 = vpop.f32.mrb[0].mxu0
      %v327 = vadd.f32 0.0, %v326
      %v328 = vpop.f32.mrb[0].mxu0
      %329 = vmatprep.mubr.bf16.mxu0 0
      %330 = vmatmul.mubr.bf16.gmra.mrb[0].mxu0 %v255
      %v331 = vpop.f32.mrb[0].mxu0
      %v332 = vadd.f32 0.0, %v331
      %v333 = vpop.f32.mrb[0].mxu0
      %v334 = vpop.f32.mrb[0].mxu0
      %v335 = vadd.f32 0.0, %v334
      %v336 = vpop.f32.mrb[0].mxu0
      %337 = vmatprep.mubr.bf16.mxu0 0
      %338 = vmatmul.mubr.bf16.gmra.mrb[0].mxu0 %v258
      %v339 = vpop.f32.mrb[0].mxu0
      %v340 = vadd.f32 0.0, %v339
      %v341 = vpop.f32.mrb[0].mxu0
      %v342 = vpop.f32.mrb[0].mxu0
      %v343 = vadd.f32 0.0, %v342
      %v344 = vpop.f32.mrb[0].mxu0
      %345 = vmatprep.mubr.bf16.mxu0 0
      %346 = vmatmul.mubr.bf16.gmra.mrb[0].mxu0 %v261
      %v347 = vpop.f32.mrb[0].mxu0
      %v348 = vadd.f32 0.0, %v347
      %v349 = vpop.f32.mrb[0].mxu0
      %v350 = vpop.f32.mrb[0].mxu0
      %v351 = vadd.f32 0.0, %v350
      %v352 = vpop.f32.mrb[0].mxu0
      %353 = vmatprep.mubr.bf16.mxu0 0
      %354 = vmatmul.mubr.bf16.gmra.mrb[0].mxu0 %v264
      %v355 = vpop.f32.mrb[0].mxu0
      %v356 = vadd.f32 0.0, %v355
      %v357 = vpop.f32.mrb[0].mxu0
      %v358 = vpop.f32.mrb[0].mxu0
      %v359 = vadd.f32 0.0, %v358
      %v360 = vpop.f32.mrb[0].mxu0
      %361 = vmatprep.mubr.bf16.mxu0 0
      %362 = vmatmul.mubr.bf16.gmra.mrb[0].mxu0 %v267
      %v363 = vpop.f32.mrb[0].mxu0
      %v364 = vadd.f32 0.0, %v363
      %v365 = vpop.f32.mrb[0].mxu0
      %v366 = vpop.f32.mrb[0].mxu0
      %v367 = vadd.f32 0.0, %v366
      %v368 = vpop.f32.mrb[0].mxu0
      %369 = vdwg.mxu0
      %v370 = vpack.c.bf16 %v311, %v308
      %v371 = vpack.c.bf16 %v319, %v316
      %v372 = vpack.c.bf16 %v327, %v324
      %v373 = vpack.c.bf16 %v335, %v332
      %v374 = vpack.c.bf16 %v343, %v340
      %v375 = vpack.c.bf16 %v351, %v348
      %v376 = vpack.c.bf16 %v359, %v356
      %v377 = vpack.c.bf16 %v367, %v364
      %v386 = vunpack.c.l.b16 %v370
      %v387 = vunpack.c.h.b16 %v370
      %v388 = vunpack.c.l.b16 %v371
      %v389 = vunpack.c.h.b16 %v371
      %v390 = vunpack.c.l.b16 %v372
      %v391 = vunpack.c.h.b16 %v372
      %v392 = vunpack.c.l.b16 %v373
      %v393 = vunpack.c.h.b16 %v373
      %v394 = vunpack.c.l.b16 %v374
      %v395 = vunpack.c.h.b16 %v374
      %v396 = vunpack.c.l.b16 %v375
      %v397 = vunpack.c.h.b16 %v375
      %v398 = vunpack.c.l.b16 %v376
      %v399 = vunpack.c.h.b16 %v376
      %v400 = vunpack.c.l.b16 %v377
      %v401 = vunpack.c.h.b16 %v377
      %v402 = vpack.c.b16 %v386, %v386
      %v403 = vpack.c.b16 %v387, %v387
      %v404 = vpack.c.b16 %v388, %v388
      %v405 = vpack.c.b16 %v389, %v389
      %v406 = vpack.c.b16 %v390, %v390
      %v407 = vpack.c.b16 %v391, %v391
      %v408 = vpack.c.b16 %v392, %v392
      %v409 = vpack.c.b16 %v393, %v393
      %v410 = vpack.c.b16 %v394, %v394
      %v411 = vpack.c.b16 %v395, %v395
      %v412 = vpack.c.b16 %v396, %v396
      %v413 = vpack.c.b16 %v397, %v397
      %v414 = vpack.c.b16 %v398, %v398
      %v415 = vpack.c.b16 %v399, %v399
      %v416 = vpack.c.b16 %v400, %v400
      %v417 = vpack.c.b16 %v401, %v401
      %vm434 = vcmask 257024
      %435 = vst.msk [vmem:[%s184] sm:$0xf] %vm434, %v402
      %436 = vst.msk [vmem:[%s184 + $0x4] sm:$0xf] %vm434, %v403
      %437 = vst.msk [vmem:[%s184 + $0x8] sm:$0xf] %vm434, %v404
      %438 = vst.msk [vmem:[%s184 + $0xc] sm:$0xf] %vm434, %v405
      %439 = vst.msk [vmem:[%s184 + $0x10] sm:$0xf] %vm434, %v406
      %440 = vst.msk [vmem:[%s184 + $0x14] sm:$0xf] %vm434, %v407
      %441 = vst.msk [vmem:[%s184 + $0x18] sm:$0xf] %vm434, %v408
      %442 = vst.msk [vmem:[%s184 + $0x1c] sm:$0xf] %vm434, %v409
      %443 = vst.msk [vmem:[%s184 + $0x20] sm:$0xf] %vm434, %v410
      %444 = vst.msk [vmem:[%s184 + $0x24] sm:$0xf] %vm434, %v411
      %445 = vst.msk [vmem:[%s184 + $0x28] sm:$0xf] %vm434, %v412
      %446 = vst.msk [vmem:[%s184 + $0x2c] sm:$0xf] %vm434, %v413
      %447 = vst.msk [vmem:[%s184 + $0x30] sm:$0xf] %vm434, %v414
      %448 = vst.msk [vmem:[%s184 + $0x34] sm:$0xf] %vm434, %v415
      %449 = vst.msk [vmem:[%s184 + $0x38] sm:$0xf] %vm434, %v416
      %450 = vst.msk [vmem:[%s184 + $0x3c] sm:$0xf] %vm434, %v417
      %s451 = smul.u32 16, %s18
      %p452 = scmp.lt.s32.totalorder %s17, 4
      %s453 = scalar_select %p452, %s17, 4
      %p454 = scmp.lt.s32.totalorder %s451, 15
      %s455 = scalar_select %p454, %s451, 15
      %s456 = smul.addr %s453, 16
      %s457 = sadd.s32 %s455, %s456
      %s458 = smul.addr %s457, 4
      %s459 = scalar_lea.vmem %s2, %s458
      // Predicated region
      $region29: #{tpu_custom_call.1} parent=27 // pred_check
        %p460 = pneg %p97
      $region30: #{tpu_custom_call.1} parent=27 // pred_check_branch
        %462 = sbr.rel (%p460) target = $region32
      $region31: #{tpu_custom_call.1} parent=27 // pred_region
        %s463 = smul.u32 16, %s18
      $region32: #{tpu_custom_call.1} parent=27 // pred_fallthru
        _
    $region28: #{tpu_custom_call.1} parent=5 // pred_fallthru
      _
    %p464 = scmp.le.s32.totalorder 2, %s8
    // Predicated region
    $region33: #{tpu_custom_call.1} parent=5 // pred_check
      %p465 = pneg %p464
    $region34: #{tpu_custom_call.1} parent=5 // pred_check_branch
      %467 = sbr.rel (%p465) target = $region36
    $region35: #{tpu_custom_call.1} parent=5 // pred_region
      %s468 = ssub.s32 %s8, 2
      // Predicated region
      $region37: #{tpu_custom_call.1} parent=35 // pred_check
        %p469 = pneg %p103
      $region38: #{tpu_custom_call.1} parent=35 // pred_check_branch
        %471 = sbr.rel (%p469) target = $region40
      $region39: #{tpu_custom_call.1} parent=35 // pred_region
        %s472 = smul.u32 16, %s20
        %p473 = scmp.lt.s32.totalorder %s19, 4
        %s474 = scalar_select %p473, %s19, 4
        %p475 = scmp.lt.s32.totalorder %s472, 15
        %s476 = scalar_select %p475, %s472, 15
        %s477 = smul.addr %s474, 16
        %s478 = sadd.s32 %s476, %s477
        %s479 = smul.addr %s478, 4
        %s480 = scalar_lea.vmem %s2, %s479
      $region40: #{tpu_custom_call.1} parent=35 // pred_fallthru
        _
    $region36: #{tpu_custom_call.1} parent=5 // pred_fallthru
      _
  $region6: #{tpu_custom_call.1} parent=0 // loop_footer
    %s12 = sadd.s32 1, %s8
  $region7: #{tpu_custom_call.1} parent=0 // loop_footer_branch
    %7 = sbr.rel target = $region3
  $region8: #{tpu_custom_call.1} parent=0 // loop_exit
    _

</llo_original>
